<compile_context>
chip_gen: v5e
topology: v5e:2x2
jax: 0.10.0
libtpu: 0.0.40
codegen_flags: <defaults>
</compile_context>

<pallas_src>
import functools

import jax
import jax.numpy as jnp
from jax.experimental import pallas as pl
from jax.experimental.pallas import tpu as pltpu


# ---------------------------------------------------------------------------
# Pallas kernel
# ---------------------------------------------------------------------------
def _equiv_update_kernel(
    pre1_ref,    # [TE, H]  layer-1 pre-activation (per-node halves precomputed)
    cdiff_ref,   # [TE, 8]  normalized coord diffs, padded 3 -> 8 columns
    emask_ref,   # [TE, 1]  edge mask (0 on padded tail edges)
    row_ref,     # [TE, 1]  int32 destination node id (segment id)
    coordT_ref,  # [8, TN]  coordinates, transposed + padded
    nmaskT_ref,  # [1, TN]  node mask, transposed + padded
    w2_ref,      # [H, H]
    b2_ref,      # [1, H]
    w3_ref,      # [1, H]   final layer weight as a row (no bias)
    out_ref,     # [8, TN]  lane-dense accumulator / output
    iota_ref,    # [TE, TN] int32 scratch: local node-index iota (hoisted)
    *,
    normalization_factor: float,
    node_tile: int,
):
    nj = pl.program_id(0)   # node-tile axis  ("parallel")
    ei = pl.program_id(1)   # edge-tile axis  ("arbitrary" reduction, innermost)

    @pl.when(ei == 0)
    def _init():
        # Hoisted out of the edge loop: regenerate once per node tile only.
        iota_ref[...] = jax.lax.broadcasted_iota(jnp.int32, iota_ref.shape, 1)
        out_ref[...] = jnp.zeros_like(out_ref)

    # coord_mlp tail: SiLU -> Linear(H,H) -> SiLU -> <row-vector dot>
    h1 = pre1_ref[...]
    h1 = h1 * jax.nn.sigmoid(h1)                                        # SiLU
    h2 = jnp.dot(h1, w2_ref[...], preferred_element_type=jnp.float32) + b2_ref[...]
    h2 = h2 * jax.nn.sigmoid(h2)                                        # SiLU

    # phi = h2 @ w3 has a 1-wide output -> VPU multiply + XLU lane reduce
    # instead of wasting an MXU matmul; fold edge_mask into the [TE,1] phi.
    phi = jnp.sum(h2 * w3_ref[...], axis=-1, keepdims=True)             # [TE, 1]
    phi = phi * emask_ref[...]

    trans = cdiff_ref[...] * phi                                        # [TE, 8]

    # Segment-sum over rows as a one-hot matmul with lane-dense output:
    #   out[c, n] += sum_e trans[e, c] * (row[e] == n)
    row_local = row_ref[...] - nj * node_tile                           # [TE, 1]
    onehot = (iota_ref[...] == row_local).astype(jnp.float32)           # [TE, TN]
    out_ref[...] += jax.lax.dot_general(
        trans, onehot, (((0,), (0,)), ((), ())),
        preferred_element_type=jnp.float32,
    )                                                                   # [8, TN]

    @pl.when(ei == pl.num_programs(1) - 1)
    def _finalize():
        agg = out_ref[...] / normalization_factor
        out_ref[...] = (coordT_ref[...] + agg) * nmaskT_ref[...]


def _round_up(x: int, m: int) -> int:
    return ((x + m - 1) // m) * m


def _pad2d(x, rows, cols):
    return jnp.pad(x, ((0, rows - x.shape[0]), (0, cols - x.shape[1])))


def equivariant_update(h, coord, edge_index, coord_diff, edge_attr, node_mask,
                       edge_mask, params, *, normalization_factor: float = 100.0,
                       edge_tile: int = 512, node_tile: int = 512):
    """JAX wrapper reproducing EquivariantUpdate.forward semantics."""
    w1, b1, w2, b2, w3 = params
    H = w2.shape[0]
    N = coord.shape[0]
    E = edge_index.shape[1]
    f32 = jnp.float32

    row = edge_index[0].astype(jnp.int32)
    col = edge_index[1].astype(jnp.int32)

    # Layer-1 of coord_mlp moved out of the edge dimension:
    #   cat([h[row], h[col], e]) @ W1 == (h @ W1a)[row] + (h @ W1b)[col] + e @ W1c
    hp = jax.lax.Precision.HIGHEST
    h1_src = jnp.dot(h.astype(f32), w1[:H], precision=hp)               # [N, H]
    h1_dst = jnp.dot(h.astype(f32), w1[H:2 * H], precision=hp)          # [N, H]
    pre1 = (h1_src[row] + h1_dst[col]
            + jnp.dot(edge_attr.astype(f32), w1[2 * H:], precision=hp)
            + b1)                                                       # [E, H]

    # Padding: edge axis to a multiple of the edge tile (>= mult of 8),
    # node axis to a multiple of 128 (lane-dense output), coord dim 3 -> 8.
    edge_tile = min(edge_tile, _round_up(E, 8))
    E_pad = _round_up(E, edge_tile)
    node_tile = min(node_tile, _round_up(N, 128))
    N_pad = _round_up(N, node_tile)

    pre1_p = _pad2d(pre1, E_pad, H)
    cdiff_p = _pad2d(coord_diff.astype(f32), E_pad, 8)                  # [E_pad, 8]
    emask_p = _pad2d(edge_mask.astype(f32), E_pad, 1)                   # zeros -> inert
    row_p = _pad2d(row.reshape(-1, 1), E_pad, 1)

    coordT = _pad2d(coord.astype(f32), N_pad, 8).T                      # [8, N_pad]
    nmaskT = _pad2d(node_mask.astype(f32), N_pad, 1).T                  # [1, N_pad]
    w3_row = w3.reshape(1, H)

    grid = (N_pad // node_tile, E_pad // edge_tile)
    kernel = functools.partial(
        _equiv_update_kernel,
        normalization_factor=float(normalization_factor),
        node_tile=node_tile,
    )

    outT = pl.pallas_call(
        kernel,
        out_shape=jax.ShapeDtypeStruct((8, N_pad), f32),
        grid=grid,
        in_specs=[
            pl.BlockSpec((edge_tile, H), lambda nj, ei: (ei, 0)),   # pre1
            pl.BlockSpec((edge_tile, 8), lambda nj, ei: (ei, 0)),   # coord_diff
            pl.BlockSpec((edge_tile, 1), lambda nj, ei: (ei, 0)),   # edge_mask
            pl.BlockSpec((edge_tile, 1), lambda nj, ei: (ei, 0)),   # row ids
            pl.BlockSpec((8, node_tile), lambda nj, ei: (0, nj)),   # coord^T
            pl.BlockSpec((1, node_tile), lambda nj, ei: (0, nj)),   # node_mask^T
            pl.BlockSpec((H, H), lambda nj, ei: (0, 0)),            # w2
            pl.BlockSpec((1, H), lambda nj, ei: (0, 0)),            # b2
            pl.BlockSpec((1, H), lambda nj, ei: (0, 0)),            # w3 row
        ],
        out_specs=pl.BlockSpec((8, node_tile), lambda nj, ei: (0, nj)),
        scratch_shapes=[pltpu.VMEM((edge_tile, node_tile), jnp.int32)],
        compiler_params=pltpu.CompilerParams(
            dimension_semantics=("parallel", "arbitrary"),
            vmem_limit_bytes=32 * 1024 * 1024,
        ),
    )(pre1_p, cdiff_p, emask_p, row_p, coordT, nmaskT, w2, b2, w3_row)

    return outT[:3, :N].T.astype(coord.dtype)


# ---------------------------------------------------------------------------
# Pure-JAX pieces of EGNN (glue around the Pallas kernel) + references
# ---------------------------------------------------------------------------
def _coord2diff(x, edge_index):
    row, col = edge_index[0], edge_index[1]
    coord_diff = x[row] - x[col]
    radial = jnp.sum(coord_diff ** 2, axis=1, keepdims=True)
    norm = jnp.sqrt(radial + 1e-8)
    return radial, coord_diff / norm


def _gcl_forward(h, edge_index, edge_attr, node_mask, edge_mask, p, norm):
    row, col = edge_index[0], edge_index[1]
    x = jnp.concatenate([h[row], h[col], edge_attr], axis=1)
    mij = jax.nn.silu(x @ p["we1"] + p["be1"])
    mij = jax.nn.silu(mij @ p["we2"] + p["be2"])
    att = jax.nn.sigmoid(mij @ p["wa"] + p["ba"])
    edge_feat = mij * att * edge_mask
    agg = jax.ops.segment_sum(edge_feat, row, num_segments=h.shape[0]) / norm
    y = jnp.concatenate([h, agg], axis=1)
    out = h + (jax.nn.silu(y @ p["wn1"] + p["bn1"]) @ p["wn2"] + p["bn2"])
    return out * node_mask, mij


def _equiv_reference(h, coord, edge_index, coord_diff, edge_attr, node_mask,
                     edge_mask, params, normalization_factor=100.0):
    w1, b1, w2, b2, w3 = params
    row, col = edge_index[0], edge_index[1]
    x = jnp.concatenate([h[row], h[col], edge_attr], axis=1)
    y = jax.nn.silu(x @ w1 + b1)
    y = jax.nn.silu(y @ w2 + b2)
    phi = y @ w3
    trans = coord_diff * phi * edge_mask
    agg = jax.ops.segment_sum(trans, row, num_segments=coord.shape[0])
    agg = agg / normalization_factor
    return (coord + agg) * node_mask


def _stack_blocks(blocks):
    return jax.tree_util.tree_map(lambda *xs: jnp.stack(xs, axis=0), *blocks)


def egnn_forward(h, x, edge_index, node_mask, edge_mask, params, *,
                 normalization_factor: float = 100.0, use_pallas: bool = True):
    """Full EGNN forward (embedding -> 9 EquivariantBlocks -> embedding_out)."""
    distances, _ = _coord2diff(x, edge_index)
    h = h @ params["emb_w"] + params["emb_b"]
    stacked = _stack_blocks(params["blocks"])

    def block_step(carry, blk):
        h, x = carry
        d_blk, coord_diff = _coord2diff(x, edge_index)
        ea = jnp.concatenate([d_blk, distances], axis=1)
        h, _ = _gcl_forward(h, edge_index, ea, node_mask, edge_mask,
                            blk["gcl0"], normalization_factor)
        h, _ = _gcl_forward(h, edge_index, ea, node_mask, edge_mask,
                            blk["gcl1"], normalization_factor)
        if use_pallas:
            x = equivariant_update(h, x, edge_index, coord_diff, ea, node_mask,
                                   edge_mask, blk["equiv"],
                                   normalization_factor=normalization_factor)
        else:
            x = _equiv_reference(h, x, edge_index, coord_diff, ea, node_mask,
                                 edge_mask, blk["equiv"], normalization_factor)
        h = h * node_mask
        return (h, x), None

    (h, x), _ = jax.lax.scan(block_step, (h, x), stacked)
    h = h @ params["out_w"] + params["out_b"]
    h = h * node_mask
    return h, x


# ---------------------------------------------------------------------------
# Parameter init (shapes match the PyTorch module)
# ---------------------------------------------------------------------------
def _linear_init(key, fan_in, fan_out, gain=None, bias=True):
    if gain is None:
        bound = 1.0 / (fan_in ** 0.5)
    else:                                  # xavier_uniform with gain
        bound = gain * (6.0 / (fan_in + fan_out)) ** 0.5
    w = jax.random.uniform(key, (fan_in, fan_out), jnp.float32, -bound, bound)
    b = jnp.zeros((1, fan_out), jnp.float32) if bias else None
    return w, b


def init_gcl_params(key, hidden_nf, edges_in_d):
    ks = jax.random.split(key, 5)
    we1, be1 = _linear_init(ks[0], 2 * hidden_nf + edges_in_d, hidden_nf)
    we2, be2 = _linear_init(ks[1], hidden_nf, hidden_nf)
    wn1, bn1 = _linear_init(ks[2], 2 * hidden_nf, hidden_nf)
    wn2, bn2 = _linear_init(ks[3], hidden_nf, hidden_nf)
    wa, ba = _linear_init(ks[4], hidden_nf, 1)
    return dict(we1=we1, be1=be1, we2=we2, be2=be2,
                wn1=wn1, bn1=bn1, wn2=wn2, bn2=bn2, wa=wa, ba=ba)


def init_equiv_params(key, hidden_nf, edges_in_d):
    ks = jax.random.split(key, 3)
    w1, b1 = _linear_init(ks[0], 2 * hidden_nf + edges_in_d, hidden_nf)
    w2, b2 = _linear_init(ks[1], hidden_nf, hidden_nf)
    w3, _ = _linear_init(ks[2], hidden_nf, 1, gain=0.001, bias=False)
    return (w1, b1, w2, b2, w3)


def init_egnn_params(key, in_node_nf, hidden_nf, n_blocks=9, edge_feat_nf=2):
    keys = jax.random.split(key, 2 + 3 * n_blocks)
    emb_w, emb_b = _linear_init(keys[0], in_node_nf, hidden_nf)
    out_w, out_b = _linear_init(keys[1], hidden_nf, in_node_nf)
    blocks = []
    for i in range(n_blocks):
        blocks.append(dict(
            gcl0=init_gcl_params(keys[2 + 3 * i], hidden_nf, edge_feat_nf),
            gcl1=init_gcl_params(keys[3 + 3 * i], hidden_nf, edge_feat_nf),
            equiv=init_equiv_params(keys[4 + 3 * i], hidden_nf, edge_feat_nf),
        ))
    return dict(emb_w=emb_w, emb_b=emb_b, out_w=out_w, out_b=out_b, blocks=blocks)


# ---------------------------------------------------------------------------
if __name__ == "__main__":
    in_node_nf = 4
    hidden_nf = 32
    n_nodes = 8

    key = jax.random.PRNGKey(0)
    kp, kh, kx, km = jax.random.split(key, 4)

    # Fully-connected edge list without self-loops (E = 56).
    rows, cols = [], []
    for a in range(n_nodes):
        for b in range(n_nodes):
            if a != b:
                rows.append(a)
                cols.append(b)
    edge_index = jnp.array([rows, cols], dtype=jnp.int32)

    h0 = jax.random.normal(kh, (n_nodes, in_node_nf), jnp.float32)
    x0 = jax.random.normal(kx, (n_nodes, 3), jnp.float32)
    node_mask = (jax.random.uniform(km, (n_nodes, 1)) > 0.1).astype(jnp.float32)
    edge_mask = node_mask[edge_index[0]] * node_mask[edge_index[1]]

    params = init_egnn_params(kp, in_node_nf, hidden_nf, n_blocks=9, edge_feat_nf=2)

    # --- standalone check of the Pallas EquivariantUpdate kernel ------------
    d0, coord_diff = _coord2diff(x0, edge_index)
    ea0 = jnp.concatenate([d0, d0], axis=1)                        # [E, 2]
    h_feat = jax.random.normal(jax.random.PRNGKey(1), (n_nodes, hidden_nf),
                               jnp.float32)
    equiv_p = params["blocks"][0]["equiv"]
    out_k = equivariant_update(h_feat, x0, edge_index, coord_diff, ea0,
                               node_mask, edge_mask, equiv_p,
                               normalization_factor=100.0)
    out_k = jax.block_until_ready(out_k)
    out_r = _equiv_reference(h_feat, x0, edge_index, coord_diff, ea0,
                             node_mask, edge_mask, equiv_p, 100.0)
    assert out_k.shape == (n_nodes, 3)
    assert jnp.allclose(out_k, out_r, atol=1e-4, rtol=1e-4), (out_k, out_r)

    # --- full EGNN forward: 9 blocks, Pallas coordinate update per block ----
    h_out, x_out = egnn_forward(h0, x0, edge_index, node_mask, edge_mask,
                                params, normalization_factor=100.0,
                                use_pallas=True)
    (h_out, x_out) = jax.block_until_ready((h_out, x_out))
    h_ref, x_ref = egnn_forward(h0, x0, edge_index, node_mask, edge_mask,
                                params, normalization_factor=100.0,
                                use_pallas=False)
    assert h_out.shape == (n_nodes, in_node_nf)
    assert x_out.shape == (n_nodes, 3)
    assert jnp.allclose(x_out, x_ref, atol=1e-3, rtol=1e-3), (x_out, x_ref)
    assert jnp.allclose(h_out, h_ref, atol=1e-3, rtol=1e-3), (h_out, h_ref)

    print("KERNEL_OK")
</pallas_src>

<mosaic_0001>
module attributes {stable_mosaic.version = 11 : i64} {
  func.func @_equiv_update_kernel(%arg0: i32, %arg1: i32, %arg2: memref<56x32xf32, #tpu.memory_space<vmem>>, %arg3: memref<56x8xf32, #tpu.memory_space<vmem>>, %arg4: memref<56x1xf32, #tpu.memory_space<vmem>>, %arg5: memref<56x1xi32, #tpu.memory_space<vmem>>, %arg6: memref<8x128xf32, #tpu.memory_space<vmem>>, %arg7: memref<1x128xf32, #tpu.memory_space<vmem>>, %arg8: memref<32x32xf32, #tpu.memory_space<vmem>>, %arg9: memref<1x32xf32, #tpu.memory_space<vmem>>, %arg10: memref<1x32xf32, #tpu.memory_space<vmem>>, %arg11: memref<8x128xf32, #tpu.memory_space<vmem>>, %arg12: memref<56x128xi32, #tpu.memory_space<vmem>>) attributes {dimension_semantics = [#tpu.dimension_semantics<parallel>, #tpu.dimension_semantics<arbitrary>], iteration_bounds = array<i64: 1, 1>, scalar_prefetch = 0 : i64, scratch_operands = 1 : i64, tpu.core_type = #tpu.core_type<tc>, window_params = [{transform_indices = @transform_0, window_bounds = array<i64: 56, 32>}, {transform_indices = @transform_1, window_bounds = array<i64: 56, 8>}, {transform_indices = @transform_2, window_bounds = array<i64: 56, 1>}, {transform_indices = @transform_3, window_bounds = array<i64: 56, 1>}, {transform_indices = @transform_4, window_bounds = array<i64: 8, 128>}, {transform_indices = @transform_5, window_bounds = array<i64: 1, 128>}, {pipeline_mode = #tpu.pipeline_mode<synchronous>, transform_indices = @transform_6, window_bounds = array<i64: 32, 32>}, {pipeline_mode = #tpu.pipeline_mode<synchronous>, transform_indices = @transform_7, window_bounds = array<i64: 1, 32>}, {pipeline_mode = #tpu.pipeline_mode<synchronous>, transform_indices = @transform_8, window_bounds = array<i64: 1, 32>}, {transform_indices = @transform_9, window_bounds = array<i64: 8, 128>}]} {
    %c0_i32 = arith.constant 0 : i32
    %0 = arith.cmpi eq, %arg1, %c0_i32 : i32
    %1 = arith.extui %0 : i1 to i32
    %c0_i32_0 = arith.constant 0 : i32
    %2 = arith.cmpi ne, %1, %c0_i32_0 : i32
    scf.if %2 {
      %47 = tpu.iota {dimensions = array<i32: 1>} : vector<56x128xi32>
      %c0_26 = arith.constant 0 : index
      %c0_27 = arith.constant 0 : index
      %48 = vector.load %arg12[%c0_26, %c0_27] : memref<56x128xi32, #tpu.memory_space<vmem>>, vector<56x128xi32>
      tpu.vector_store %arg12[%c0_26, %c0_27], %47 {strides = array<i32>} : memref<56x128xi32, #tpu.memory_space<vmem>>, vector<56x128xi32>,
      %cst_28 = arith.constant 0.000000e+00 : f32
      %49 = vector.broadcast %cst_28 : f32 to vector<8x128xf32>
      %c0_29 = arith.constant 0 : index
      %c0_30 = arith.constant 0 : index
      %50 = vector.load %arg11[%c0_29, %c0_30] : memref<8x128xf32, #tpu.memory_space<vmem>>, vector<8x128xf32>
      tpu.vector_store %arg11[%c0_29, %c0_30], %49 {strides = array<i32>} : memref<8x128xf32, #tpu.memory_space<vmem>>, vector<8x128xf32>,
    } else {
    }
    %c0 = arith.constant 0 : index
    %c0_1 = arith.constant 0 : index
    %3 = vector.load %arg2[%c0, %c0_1] : memref<56x32xf32, #tpu.memory_space<vmem>>, vector<56x32xf32>
    %4 = arith.negf %3 : vector<56x32xf32>
    %5 = math.exp %4 : vector<56x32xf32>
    %cst = arith.constant 1.000000e+00 : f32
    %6 = vector.broadcast %cst : f32 to vector<56x32xf32>
    %7 = arith.addf %6, %5 : vector<56x32xf32>
    %8 = arith.divf %6, %7 : vector<56x32xf32>
    %9 = arith.mulf %3, %8 : vector<56x32xf32>
    %c0_2 = arith.constant 0 : index
    %c0_3 = arith.constant 0 : index
    %10 = vector.load %arg8[%c0_2, %c0_3] : memref<32x32xf32, #tpu.memory_space<vmem>>, vector<32x32xf32>
    %cst_4 = arith.constant dense<0.000000e+00> : vector<56x32xf32>
    %11 = tpu.matmul %9, %10, %cst_4 {dimension_numbers = #tpu.dot_dimension_numbers<[1], [0], [0], [1], [0, 0, 1, 1], [], []>} : vector<56x32xf32>, vector<32x32xf32>, vector<56x32xf32> -> vector<56x32xf32>
    %c0_5 = arith.constant 0 : index
    %c0_6 = arith.constant 0 : index
    %12 = vector.load %arg9[%c0_5, %c0_6] : memref<1x32xf32, #tpu.memory_space<vmem>>, vector<1x32xf32>
    %13 = vector.broadcast %12 : vector<1x32xf32> to vector<56x32xf32>
    %14 = arith.addf %11, %13 : vector<56x32xf32>
    %15 = arith.negf %14 : vector<56x32xf32>
    %16 = math.exp %15 : vector<56x32xf32>
    %cst_7 = arith.constant 1.000000e+00 : f32
    %17 = vector.broadcast %cst_7 : f32 to vector<56x32xf32>
    %18 = arith.addf %17, %16 : vector<56x32xf32>
    %19 = arith.divf %17, %18 : vector<56x32xf32>
    %20 = arith.mulf %14, %19 : vector<56x32xf32>
    %c0_8 = arith.constant 0 : index
    %c0_9 = arith.constant 0 : index
    %21 = vector.load %arg10[%c0_8, %c0_9] : memref<1x32xf32, #tpu.memory_space<vmem>>, vector<1x32xf32>
    %22 = vector.broadcast %21 : vector<1x32xf32> to vector<56x32xf32>
    %23 = arith.mulf %20, %22 : vector<56x32xf32>
    %cst_10 = arith.constant dense<0.000000e+00> : vector<56xf32>
    %24 = vector.multi_reduction <add>, %23, %cst_10 [1] : vector<56x32xf32> to vector<56xf32>
    %25 = vector.shape_cast %24 : vector<56xf32> to vector<56x1xf32>
    %c0_11 = arith.constant 0 : index
    %c0_12 = arith.constant 0 : index
    %26 = vector.load %arg4[%c0_11, %c0_12] : memref<56x1xf32, #tpu.memory_space<vmem>>, vector<56x1xf32>
    %27 = arith.mulf %25, %26 : vector<56x1xf32>
    %c0_13 = arith.constant 0 : index
    %c0_14 = arith.constant 0 : index
    %28 = vector.load %arg3[%c0_13, %c0_14] : memref<56x8xf32, #tpu.memory_space<vmem>>, vector<56x8xf32>
    %29 = vector.broadcast %27 : vector<56x1xf32> to vector<56x8xf32>
    %30 = arith.mulf %28, %29 : vector<56x8xf32>
    %c0_15 = arith.constant 0 : index
    %c0_16 = arith.constant 0 : index
    %31 = vector.load %arg5[%c0_15, %c0_16] : memref<56x1xi32, #tpu.memory_space<vmem>>, vector<56x1xi32>
    %c128_i32 = arith.constant 128 : i32
    %32 = arith.muli %arg0, %c128_i32 : i32
    %33 = vector.broadcast %32 : i32 to vector<56x1xi32>
    %34 = arith.subi %31, %33 : vector<56x1xi32>
    %c0_17 = arith.constant 0 : index
    %c0_18 = arith.constant 0 : index
    %35 = vector.load %arg12[%c0_17, %c0_18] : memref<56x128xi32, #tpu.memory_space<vmem>>, vector<56x128xi32>
    %36 = vector.broadcast %34 : vector<56x1xi32> to vector<56x128xi32>
    %37 = arith.cmpi eq, %35, %36 : vector<56x128xi32>
    %38 = arith.extui %37 : vector<56x128xi1> to vector<56x128xi32>
    %39 = arith.sitofp %38 : vector<56x128xi32> to vector<56x128xf32>
    %c0_19 = arith.constant 0 : index
    %c0_20 = arith.constant 0 : index
    %40 = vector.load %arg11[%c0_19, %c0_20] : memref<8x128xf32, #tpu.memory_space<vmem>>, vector<8x128xf32>
    %cst_21 = arith.constant dense<0.000000e+00> : vector<8x128xf32>
    %41 = tpu.matmul %30, %39, %cst_21 {dimension_numbers = #tpu.dot_dimension_numbers<[0], [0], [1], [1], [0, 1, 1, 1], [], []>} : vector<56x8xf32>, vector<56x128xf32>, vector<8x128xf32> -> vector<8x128xf32>
    %42 = arith.addf %40, %41 : vector<8x128xf32>
    %c0_22 = arith.constant 0 : index
    %c0_23 = arith.constant 0 : index
    %43 = vector.load %arg11[%c0_22, %c0_23] : memref<8x128xf32, #tpu.memory_space<vmem>>, vector<8x128xf32>
    tpu.vector_store %arg11[%c0_22, %c0_23], %42 {strides = array<i32>} : memref<8x128xf32, #tpu.memory_space<vmem>>, vector<8x128xf32>,
    %c0_i32_24 = arith.constant 0 : i32
    %44 = arith.cmpi eq, %arg1, %c0_i32_24 : i32
    %45 = arith.extui %44 : i1 to i32
    %c0_i32_25 = arith.constant 0 : i32
    %46 = arith.cmpi ne, %45, %c0_i32_25 : i32
    scf.if %46 {
      %c0_26 = arith.constant 0 : index
      %c0_27 = arith.constant 0 : index
      %47 = vector.load %arg11[%c0_26, %c0_27] : memref<8x128xf32, #tpu.memory_space<vmem>>, vector<8x128xf32>
      %cst_28 = arith.constant 1.000000e+02 : f32
      %48 = vector.broadcast %cst_28 : f32 to vector<8x128xf32>
      %49 = arith.divf %47, %48 : vector<8x128xf32>
      %c0_29 = arith.constant 0 : index
      %c0_30 = arith.constant 0 : index
      %50 = vector.load %arg6[%c0_29, %c0_30] : memref<8x128xf32, #tpu.memory_space<vmem>>, vector<8x128xf32>
      %51 = arith.addf %50, %49 : vector<8x128xf32>
      %c0_31 = arith.constant 0 : index
      %c0_32 = arith.constant 0 : index
      %52 = vector.load %arg7[%c0_31, %c0_32] : memref<1x128xf32, #tpu.memory_space<vmem>>, vector<1x128xf32>
      %53 = vector.broadcast %52 : vector<1x128xf32> to vector<8x128xf32>
      %54 = arith.mulf %51, %53 : vector<8x128xf32>
      %c0_33 = arith.constant 0 : index
      %c0_34 = arith.constant 0 : index
      %55 = vector.load %arg11[%c0_33, %c0_34] : memref<8x128xf32, #tpu.memory_space<vmem>>, vector<8x128xf32>
      tpu.vector_store %arg11[%c0_33, %c0_34], %54 {strides = array<i32>} : memref<8x128xf32, #tpu.memory_space<vmem>>, vector<8x128xf32>,
    } else {
    }
    return
  }
  func.func @transform_0(%arg0: i32, %arg1: i32) -> (i32, i32) {
    %c0_i32 = arith.constant 0 : i32
    %c0_i32_0 = arith.constant 0 : i32
    return %arg1, %c0_i32 : i32, i32
  }
  func.func @transform_1(%arg0: i32, %arg1: i32) -> (i32, i32) {
    %c0_i32 = arith.constant 0 : i32
    %c0_i32_0 = arith.constant 0 : i32
    return %arg1, %c0_i32 : i32, i32
  }
  func.func @transform_2(%arg0: i32, %arg1: i32) -> (i32, i32) {
    %c0_i32 = arith.constant 0 : i32
    %c0_i32_0 = arith.constant 0 : i32
    return %arg1, %c0_i32 : i32, i32
  }
  func.func @transform_3(%arg0: i32, %arg1: i32) -> (i32, i32) {
    %c0_i32 = arith.constant 0 : i32
    %c0_i32_0 = arith.constant 0 : i32
    return %arg1, %c0_i32 : i32, i32
  }
  func.func @transform_4(%arg0: i32, %arg1: i32) -> (i32, i32) {
    %c0_i32 = arith.constant 0 : i32
    %c0_i32_0 = arith.constant 0 : i32
    return %c0_i32, %arg0 : i32, i32
  }
  func.func @transform_5(%arg0: i32, %arg1: i32) -> (i32, i32) {
    %c0_i32 = arith.constant 0 : i32
    %c0_i32_0 = arith.constant 0 : i32
    return %c0_i32, %arg0 : i32, i32
  }
  func.func @transform_6(%arg0: i32, %arg1: i32) -> (i32, i32) {
    %c0_i32 = arith.constant 0 : i32
    %c0_i32_0 = arith.constant 0 : i32
    %c0_i32_1 = arith.constant 0 : i32
    return %c0_i32, %c0_i32_0 : i32, i32
  }
  func.func @transform_7(%arg0: i32, %arg1: i32) -> (i32, i32) {
    %c0_i32 = arith.constant 0 : i32
    %c0_i32_0 = arith.constant 0 : i32
    %c0_i32_1 = arith.constant 0 : i32
    return %c0_i32, %c0_i32_0 : i32, i32
  }
  func.func @transform_8(%arg0: i32, %arg1: i32) -> (i32, i32) {
    %c0_i32 = arith.constant 0 : i32
    %c0_i32_0 = arith.constant 0 : i32
    %c0_i32_1 = arith.constant 0 : i32
    return %c0_i32, %c0_i32_0 : i32, i32
  }
  func.func @transform_9(%arg0: i32, %arg1: i32) -> (i32, i32) {
    %c0_i32 = arith.constant 0 : i32
    %c0_i32_0 = arith.constant 0 : i32
    return %c0_i32, %arg0 : i32, i32
  }
}

</mosaic_0001>

<llo_original>
// kernel: tpu_custom_call.1
$region0: #{tpu_custom_call.1}
  #allocation0 [shape = 'u32[]', space=smem, size = 0x4, offset = 0x4, fixed_abs, tag = 'smem constant byte address 0x4 - core index']
  #allocation1 [shape = 'u32[72,128]{1,0:T(1,128)}', space=vmem, size = 0x9000, scoped, tag = 'internal scratch']
  #allocation2 [shape = 's32[56,128]{1,0:T(8,128)}', space=vmem, size = 0x7000, scoped, tag = 'scratch operand']
  %s0 = inlined_call_operand.vmem [shape: f32[56,32], index: 0, kind: input, shape index: {}]
  %s1 = inlined_call_operand.vmem [shape: f32[56,8], index: 1, kind: input, shape index: {}]
  %s2 = inlined_call_operand.vmem [shape: f32[56,1], index: 2, kind: input, shape index: {}]
  %s3 = inlined_call_operand.vmem [shape: s32[56,1], index: 3, kind: input, shape index: {}]
  %s4 = inlined_call_operand.vmem [shape: f32[8,128], index: 4, kind: input, shape index: {}]
  %s5 = inlined_call_operand.vmem [shape: f32[1,128], index: 5, kind: input, shape index: {}]
  %s6 = inlined_call_operand.vmem [shape: f32[32,32], index: 6, kind: input, shape index: {}]
  %s7 = inlined_call_operand.vmem [shape: f32[1,32], index: 7, kind: input, shape index: {}]
  %s8 = inlined_call_operand.vmem [shape: f32[1,32], index: 8, kind: input, shape index: {}]
  %s9 = inlined_call_operand.hbm [shape: f32[8,128], index: 9, kind: output, shape index: {}]
  %s10 = sld [smem:[#allocation0]]
  $region54: #{tpu_custom_call.1} parent=0
    _
  %s12 = ssub.s32 1, %s10
  %s13 = scalar_select 0, %s12, %s10
  $region1: #{tpu_custom_call.1} parent=0
    #allocation3 [shape = 'u8[4096]{0}', space=vmem, size = 0x1000, scoped, tag = 'output window, operand 0, single buffered']
    #allocation4 [shape = 's32[1]{0}', space=sflag, size = 0x4, scoped, tag = 'scoped memory for tpu_custom_call.1']
    %14 = vsyncpa [#allocation4], 0
    // Predicated region
    $region2: #{tpu_custom_call.1} parent=1 // pred_check
      _
    $region3: #{tpu_custom_call.1} parent=1 // pred_check_branch
      %16 = sbr.rel (0) target = $region5
    $region4: #{tpu_custom_call.1} parent=1 // pred_region
      _
    $region5: #{tpu_custom_call.1} parent=1 // pred_fallthru
      _
    // Predicated region
    $region6: #{tpu_custom_call.1} parent=1 // pred_check
      _
    $region7: #{tpu_custom_call.1} parent=1 // pred_check_branch
      %18 = sbr.rel (0) target = $region9
    $region8: #{tpu_custom_call.1} parent=1 // pred_region
      _
    $region9: #{tpu_custom_call.1} parent=1 // pred_fallthru
      _
    // Predicated region
    $region10: #{tpu_custom_call.1} parent=1 // pred_check
      _
    $region11: #{tpu_custom_call.1} parent=1 // pred_check_branch
      %20 = sbr.rel (0) target = $region13
    $region12: #{tpu_custom_call.1} parent=1 // pred_region
      _
    $region13: #{tpu_custom_call.1} parent=1 // pred_fallthru
      _
    // Predicated region
    $region14: #{tpu_custom_call.1} parent=1 // pred_check
      _
    $region15: #{tpu_custom_call.1} parent=1 // pred_check_branch
      %22 = sbr.rel (0) target = $region17
    $region16: #{tpu_custom_call.1} parent=1 // pred_region
      _
    $region17: #{tpu_custom_call.1} parent=1 // pred_fallthru
      _
    // Predicated region
    $region18: #{tpu_custom_call.1} parent=1 // pred_check
      _
    $region19: #{tpu_custom_call.1} parent=1 // pred_check_branch
      %24 = sbr.rel (0) target = $region21
    $region20: #{tpu_custom_call.1} parent=1 // pred_region
      _
    $region21: #{tpu_custom_call.1} parent=1 // pred_fallthru
      _
    // Predicated region
    $region22: #{tpu_custom_call.1} parent=1 // pred_check
      _
    $region23: #{tpu_custom_call.1} parent=1 // pred_check_branch
      %26 = sbr.rel (0) target = $region25
    $region24: #{tpu_custom_call.1} parent=1 // pred_region
      _
    $region25: #{tpu_custom_call.1} parent=1 // pred_fallthru
      _
    // Predicated region
    $region26: #{tpu_custom_call.1} parent=1 // pred_check
      _
    $region27: #{tpu_custom_call.1} parent=1 // pred_check_branch
      %28 = sbr.rel (0) target = $region29
    $region28: #{tpu_custom_call.1} parent=1 // pred_region
      _
    $region29: #{tpu_custom_call.1} parent=1 // pred_fallthru
      _
    // Predicated region
    $region30: #{tpu_custom_call.1} parent=1 // pred_check
      _
    $region31: #{tpu_custom_call.1} parent=1 // pred_check_branch
      %30 = sbr.rel (0) target = $region33
    $region32: #{tpu_custom_call.1} parent=1 // pred_region
      _
    $region33: #{tpu_custom_call.1} parent=1 // pred_fallthru
      _
    // Predicated region
    $region34: #{tpu_custom_call.1} parent=1 // pred_check
      _
    $region35: #{tpu_custom_call.1} parent=1 // pred_check_branch
      %32 = sbr.rel (0) target = $region37
    $region36: #{tpu_custom_call.1} parent=1 // pred_region
      _
    $region37: #{tpu_custom_call.1} parent=1 // pred_fallthru
      _
    %p33 = scmp.eq.s32.totalorder 0, 0
    // Predicated region
    $region38: #{tpu_custom_call.1} parent=1 // pred_check
      %p34 = pneg %p33
    $region39: #{tpu_custom_call.1} parent=1 // pred_check_branch
      %36 = sbr.rel (%p34) target = $region41
    $region40: #{tpu_custom_call.1} parent=1 // pred_region
      %v37 = vlaneseq
      %v38 = vand.u32 %v37, 127
      %39 = vst [vmem:[#allocation2] sm:$0xff] %v38
      %40 = vst [vmem:[#allocation2 + $0x8] sm:$0xff] %v38
      %41 = vst [vmem:[#allocation2 + $0x10] sm:$0xff] %v38
      %42 = vst [vmem:[#allocation2 + $0x18] sm:$0xff] %v38
      %43 = vst [vmem:[#allocation2 + $0x20] sm:$0xff] %v38
      %44 = vst [vmem:[#allocation2 + $0x28] sm:$0xff] %v38
      %45 = vst [vmem:[#allocation2 + $0x30] sm:$0xff] %v38
      %46 = vst [vmem:[#allocation3] sm:$0xff] 0.0
    $region41: #{tpu_custom_call.1} parent=1 // pred_fallthru
      _
    %v47 = vld [vmem:[%s0] sm:$0xff]
    %v48 = vld [vmem:[%s0 + $0x8] sm:$0xff]
    %v49 = vld [vmem:[%s0 + $0x10] sm:$0xff]
    %v50 = vld [vmem:[%s0 + $0x18] sm:$0xff]
    %v51 = vld [vmem:[%s0 + $0x20] sm:$0xff]
    %v52 = vld [vmem:[%s0 + $0x28] sm:$0xff]
    %v53 = vld [vmem:[%s0 + $0x30] sm:$0xff]
    %v54 = vxor.u32 %v47, 2147483648
    %v55 = vxor.u32 %v48, 2147483648
    %v56 = vxor.u32 %v49, 2147483648
    %v57 = vxor.u32 %v50, 2147483648
    %v58 = vxor.u32 %v51, 2147483648
    %v59 = vxor.u32 %v52, 2147483648
    %v60 = vxor.u32 %v53, 2147483648
    %v61 = vmul.f32 %v54, 1.442695
    %v62 = vpow.pop %v61
    %v63 = vmul.f32 %v55, 1.442695
    %v64 = vpow.pop %v63
    %v65 = vmul.f32 %v56, 1.442695
    %v66 = vpow.pop %v65
    %v67 = vmul.f32 %v57, 1.442695
    %v68 = vpow.pop %v67
    %v69 = vmul.f32 %v58, 1.442695
    %v70 = vpow.pop %v69
    %v71 = vmul.f32 %v59, 1.442695
    %v72 = vpow.pop %v71
    %v73 = vmul.f32 %v60, 1.442695
    %v74 = vpow.pop %v73
    %v75 = vadd.f32 %v62, 1.0
    %v76 = vadd.f32 %v64, 1.0
    %v77 = vadd.f32 %v66, 1.0
    %v78 = vadd.f32 %v68, 1.0
    %v79 = vadd.f32 %v70, 1.0
    %v80 = vadd.f32 %v72, 1.0
    %v81 = vadd.f32 %v74, 1.0
    %v82 = vrcp.pop %v75
    %v83 = vmul.f32 %v75, %v82
    %v84 = vsub.f32 1.0, %v83
    %v85 = vmul.f32 %v82, %v84
    %v86 = vadd.f32 %v82, %v85
    %vm87 = vweird.f32 %v75
    %vm88 = vweird.f32 %v82
    %vm89 = vmor %vm87, %vm88
    %v90 = vsel %vm89, %v82, %v86
    %v91 = vand.u32 2147483647, %v75
    %vm92 = vcmp.eq.f32.partialorder %v91, 8.507059e+37
    %v93 = vand.u32 %v75, 2147483648
    %v94 = vor.u32 1.1754944e-38, %v93
    %v95 = vsel %vm92, %v94, %v90
    %v96 = vmul.f32 1.0, %v95
    %v97 = vrcp.pop %v76
    %v98 = vmul.f32 %v76, %v97
    %v99 = vsub.f32 1.0, %v98
    %v100 = vmul.f32 %v97, %v99
    %v101 = vadd.f32 %v97, %v100
    %vm102 = vweird.f32 %v76
    %vm103 = vweird.f32 %v97
    %vm104 = vmor %vm102, %vm103
    %v105 = vsel %vm104, %v97, %v101
    %v106 = vand.u32 2147483647, %v76
    %vm107 = vcmp.eq.f32.partialorder %v106, 8.507059e+37
    %v108 = vand.u32 %v76, 2147483648
    %v109 = vor.u32 1.1754944e-38, %v108
    %v110 = vsel %vm107, %v109, %v105
    %v111 = vmul.f32 1.0, %v110
    %v112 = vrcp.pop %v77
    %v113 = vmul.f32 %v77, %v112
    %v114 = vsub.f32 1.0, %v113
    %v115 = vmul.f32 %v112, %v114
    %v116 = vadd.f32 %v112, %v115
    %vm117 = vweird.f32 %v77
    %vm118 = vweird.f32 %v112
    %vm119 = vmor %vm117, %vm118
    %v120 = vsel %vm119, %v112, %v116
    %v121 = vand.u32 2147483647, %v77
    %vm122 = vcmp.eq.f32.partialorder %v121, 8.507059e+37
    %v123 = vand.u32 %v77, 2147483648
    %v124 = vor.u32 1.1754944e-38, %v123
    %v125 = vsel %vm122, %v124, %v120
    %v126 = vmul.f32 1.0, %v125
    %v127 = vrcp.pop %v78
    %v128 = vmul.f32 %v78, %v127
    %v129 = vsub.f32 1.0, %v128
    %v130 = vmul.f32 %v127, %v129
    %v131 = vadd.f32 %v127, %v130
    %vm132 = vweird.f32 %v78
    %vm133 = vweird.f32 %v127
    %vm134 = vmor %vm132, %vm133
    %v135 = vsel %vm134, %v127, %v131
    %v136 = vand.u32 2147483647, %v78
    %vm137 = vcmp.eq.f32.partialorder %v136, 8.507059e+37
    %v138 = vand.u32 %v78, 2147483648
    %v139 = vor.u32 1.1754944e-38, %v138
    %v140 = vsel %vm137, %v139, %v135
    %v141 = vmul.f32 1.0, %v140
    %v142 = vrcp.pop %v79
    %v143 = vmul.f32 %v79, %v142
    %v144 = vsub.f32 1.0, %v143
    %v145 = vmul.f32 %v142, %v144
    %v146 = vadd.f32 %v142, %v145
    %vm147 = vweird.f32 %v79
    %vm148 = vweird.f32 %v142
    %vm149 = vmor %vm147, %vm148
    %v150 = vsel %vm149, %v142, %v146
    %v151 = vand.u32 2147483647, %v79
    %vm152 = vcmp.eq.f32.partialorder %v151, 8.507059e+37
    %v153 = vand.u32 %v79, 2147483648
    %v154 = vor.u32 1.1754944e-38, %v153
    %v155 = vsel %vm152, %v154, %v150
    %v156 = vmul.f32 1.0, %v155
    %v157 = vrcp.pop %v80
    %v158 = vmul.f32 %v80, %v157
    %v159 = vsub.f32 1.0, %v158
    %v160 = vmul.f32 %v157, %v159
    %v161 = vadd.f32 %v157, %v160
    %vm162 = vweird.f32 %v80
    %vm163 = vweird.f32 %v157
    %vm164 = vmor %vm162, %vm163
    %v165 = vsel %vm164, %v157, %v161
    %v166 = vand.u32 2147483647, %v80
    %vm167 = vcmp.eq.f32.partialorder %v166, 8.507059e+37
    %v168 = vand.u32 %v80, 2147483648
    %v169 = vor.u32 1.1754944e-38, %v168
    %v170 = vsel %vm167, %v169, %v165
    %v171 = vmul.f32 1.0, %v170
    %v172 = vrcp.pop %v81
    %v173 = vmul.f32 %v81, %v172
    %v174 = vsub.f32 1.0, %v173
    %v175 = vmul.f32 %v172, %v174
    %v176 = vadd.f32 %v172, %v175
    %vm177 = vweird.f32 %v81
    %vm178 = vweird.f32 %v172
    %vm179 = vmor %vm177, %vm178
    %v180 = vsel %vm179, %v172, %v176
    %v181 = vand.u32 2147483647, %v81
    %vm182 = vcmp.eq.f32.partialorder %v181, 8.507059e+37
    %v183 = vand.u32 %v81, 2147483648
    %v184 = vor.u32 1.1754944e-38, %v183
    %v185 = vsel %vm182, %v184, %v180
    %v186 = vmul.f32 1.0, %v185
    %v187 = vmul.f32 %v47, %v96
    %v188 = vmul.f32 %v48, %v111
    %v189 = vmul.f32 %v49, %v126
    %v190 = vmul.f32 %v50, %v141
    %v191 = vmul.f32 %v51, %v156
    %v192 = vmul.f32 %v52, %v171
    %v193 = vmul.f32 %v53, %v186
    %v194 = vld [vmem:[%s6] sm:$0xff]
    %v195 = vld [vmem:[%s6 + $0x8] sm:$0xff]
    %v196 = vld [vmem:[%s6 + $0x10] sm:$0xff]
    %v197 = vld [vmem:[%s6 + $0x18] sm:$0xff]
    %v198 = vld [vmem:[%s7] sm:$0x1]
    %v200 = vperm.slane %v198, 0
    %vm202 = vcmask 261120
    %v204 = vsel %vm202, %v187, 0
    %v207 = vsel %vm202, %v188, 0
    %v210 = vsel %vm202, %v189, 0
    %v213 = vsel %vm202, %v190, 0
    %v216 = vsel %vm202, %v191, 0
    %v219 = vsel %vm202, %v192, 0
    %v222 = vsel %vm202, %v193, 0
    %224 = vmatpush.msra.mxu0 0.0
    %225 = vmatpush.msra.mxu0 0.0
    %226 = vmatpush.msra.mxu0 0.0
    %227 = vmatpush.msra.mxu0 0.0
    %228 = vmatpush.msra.mxu0 0.0
    %229 = vmatpush.msra.mxu0 0.0
    %230 = vmatpush.msra.mxu0 0.0
    %231 = vmatpush.msra.mxu0 0.0
    %232 = vmatpush.msra.mxu0 0.0
    %233 = vmatpush.msra.mxu0 0.0
    %234 = vmatpush.msra.mxu0 0.0
    %235 = vmatpush.msra.mxu0 0.0
    %236 = vmatpush.msra.mxu0 %v197
    %237 = vmatpush.msra.mxu0 %v196
    %238 = vmatpush.msra.mxu0 %v195
    %239 = vmatpush.msra.mxu0 %v194
    %240 = vmatmul.f32.gmra.mxu0 %v204
    %v241 = vpop.f32.mrf.mxu0
    %v242 = vadd.f32 %v200, %v241
    %243 = vmatmul.f32.gmra.mxu0 %v207
    %v244 = vpop.f32.mrf.mxu0
    %v245 = vadd.f32 %v200, %v244
    %246 = vmatmul.f32.gmra.mxu0 %v210
    %v247 = vpop.f32.mrf.mxu0
    %v248 = vadd.f32 %v200, %v247
    %249 = vmatmul.f32.gmra.mxu0 %v213
    %v250 = vpop.f32.mrf.mxu0
    %v251 = vadd.f32 %v200, %v250
    %252 = vmatmul.f32.gmra.mxu0 %v216
    %v253 = vpop.f32.mrf.mxu0
    %v254 = vadd.f32 %v200, %v253
    %255 = vmatmul.f32.gmra.mxu0 %v219
    %v256 = vpop.f32.mrf.mxu0
    %v257 = vadd.f32 %v200, %v256
    %258 = vmatmul.f32.gmra.mxu0 %v222
    %v259 = vpop.f32.mrf.mxu0
    %v260 = vadd.f32 %v200, %v259
    %261 = vdwg.mxu0
    %v262 = vxor.u32 %v242, 2147483648
    %v263 = vxor.u32 %v245, 2147483648
    %v264 = vxor.u32 %v248, 2147483648
    %v265 = vxor.u32 %v251, 2147483648
    %v266 = vxor.u32 %v254, 2147483648
    %v267 = vxor.u32 %v257, 2147483648
    %v268 = vxor.u32 %v260, 2147483648
    %v269 = vmul.f32 %v262, 1.442695
    %v270 = vpow.pop %v269
    %v271 = vmul.f32 %v263, 1.442695
    %v272 = vpow.pop %v271
    %v273 = vmul.f32 %v264, 1.442695
    %v274 = vpow.pop %v273
    %v275 = vmul.f32 %v265, 1.442695
    %v276 = vpow.pop %v275
    %v277 = vmul.f32 %v266, 1.442695
    %v278 = vpow.pop %v277
    %v279 = vmul.f32 %v267, 1.442695
    %v280 = vpow.pop %v279
    %v281 = vmul.f32 %v268, 1.442695
    %v282 = vpow.pop %v281
    %v283 = vadd.f32 %v270, 1.0
    %v284 = vadd.f32 %v272, 1.0
    %v285 = vadd.f32 %v274, 1.0
    %v286 = vadd.f32 %v276, 1.0
    %v287 = vadd.f32 %v278, 1.0
    %v288 = vadd.f32 %v280, 1.0
    %v289 = vadd.f32 %v282, 1.0
    %v290 = vrcp.pop %v283
    %v291 = vmul.f32 %v283, %v290
    %v292 = vsub.f32 1.0, %v291
    %v293 = vmul.f32 %v290, %v292
    %v294 = vadd.f32 %v290, %v293
    %vm295 = vweird.f32 %v283
    %vm296 = vweird.f32 %v290
    %vm297 = vmor %vm295, %vm296
    %v298 = vsel %vm297, %v290, %v294
    %v299 = vand.u32 2147483647, %v283
    %vm300 = vcmp.eq.f32.partialorder %v299, 8.507059e+37
    %v301 = vand.u32 %v283, 2147483648
    %v302 = vor.u32 1.1754944e-38, %v301
    %v303 = vsel %vm300, %v302, %v298
    %v304 = vmul.f32 1.0, %v303
    %v305 = vrcp.pop %v284
    %v306 = vmul.f32 %v284, %v305
    %v307 = vsub.f32 1.0, %v306
    %v308 = vmul.f32 %v305, %v307
    %v309 = vadd.f32 %v305, %v308
    %vm310 = vweird.f32 %v284
    %vm311 = vweird.f32 %v305
    %vm312 = vmor %vm310, %vm311
    %v313 = vsel %vm312, %v305, %v309
    %v314 = vand.u32 2147483647, %v284
    %vm315 = vcmp.eq.f32.partialorder %v314, 8.507059e+37
    %v316 = vand.u32 %v284, 2147483648
    %v317 = vor.u32 1.1754944e-38, %v316
    %v318 = vsel %vm315, %v317, %v313
    %v319 = vmul.f32 1.0, %v318
    %v320 = vrcp.pop %v285
    %v321 = vmul.f32 %v285, %v320
    %v322 = vsub.f32 1.0, %v321
    %v323 = vmul.f32 %v320, %v322
    %v324 = vadd.f32 %v320, %v323
    %vm325 = vweird.f32 %v285
    %vm326 = vweird.f32 %v320
    %vm327 = vmor %vm325, %vm326
    %v328 = vsel %vm327, %v320, %v324
    %v329 = vand.u32 2147483647, %v285
    %vm330 = vcmp.eq.f32.partialorder %v329, 8.507059e+37
    %v331 = vand.u32 %v285, 2147483648
    %v332 = vor.u32 1.1754944e-38, %v331
    %v333 = vsel %vm330, %v332, %v328
    %v334 = vmul.f32 1.0, %v333
    %v335 = vrcp.pop %v286
    %v336 = vmul.f32 %v286, %v335
    %v337 = vsub.f32 1.0, %v336
    %v338 = vmul.f32 %v335, %v337
    %v339 = vadd.f32 %v335, %v338
    %vm340 = vweird.f32 %v286
    %vm341 = vweird.f32 %v335
    %vm342 = vmor %vm340, %vm341
    %v343 = vsel %vm342, %v335, %v339
    %v344 = vand.u32 2147483647, %v286
    %vm345 = vcmp.eq.f32.partialorder %v344, 8.507059e+37
    %v346 = vand.u32 %v286, 2147483648
    %v347 = vor.u32 1.1754944e-38, %v346
    %v348 = vsel %vm345, %v347, %v343
    %v349 = vmul.f32 1.0, %v348
    %v350 = vrcp.pop %v287
    %v351 = vmul.f32 %v287, %v350
    %v352 = vsub.f32 1.0, %v351
    %v353 = vmul.f32 %v350, %v352
    %v354 = vadd.f32 %v350, %v353
    %vm355 = vweird.f32 %v287
    %vm356 = vweird.f32 %v350
    %vm357 = vmor %vm355, %vm356
    %v358 = vsel %vm357, %v350, %v354
    %v359 = vand.u32 2147483647, %v287
    %vm360 = vcmp.eq.f32.partialorder %v359, 8.507059e+37
    %v361 = vand.u32 %v287, 2147483648
    %v362 = vor.u32 1.1754944e-38, %v361
    %v363 = vsel %vm360, %v362, %v358
    %v364 = vmul.f32 1.0, %v363
    %v365 = vrcp.pop %v288
    %v366 = vmul.f32 %v288, %v365
    %v367 = vsub.f32 1.0, %v366
    %v368 = vmul.f32 %v365, %v367
    %v369 = vadd.f32 %v365, %v368
    %vm370 = vweird.f32 %v288
    %vm371 = vweird.f32 %v365
    %vm372 = vmor %vm370, %vm371
    %v373 = vsel %vm372, %v365, %v369
    %v374 = vand.u32 2147483647, %v288
    %vm375 = vcmp.eq.f32.partialorder %v374, 8.507059e+37
    %v376 = vand.u32 %v288, 2147483648
    %v377 = vor.u32 1.1754944e-38, %v376
    %v378 = vsel %vm375, %v377, %v373
    %v379 = vmul.f32 1.0, %v378
    %v380 = vrcp.pop %v289
    %v381 = vmul.f32 %v289, %v380
    %v382 = vsub.f32 1.0, %v381
    %v383 = vmul.f32 %v380, %v382
    %v384 = vadd.f32 %v380, %v383
    %vm385 = vweird.f32 %v289
    %vm386 = vweird.f32 %v380
    %vm387 = vmor %vm385, %vm386
    %v388 = vsel %vm387, %v380, %v384
    %v389 = vand.u32 2147483647, %v289
    %vm390 = vcmp.eq.f32.partialorder %v389, 8.507059e+37
    %v391 = vand.u32 %v289, 2147483648
    %v392 = vor.u32 1.1754944e-38, %v391
    %v393 = vsel %vm390, %v392, %v388
    %v394 = vmul.f32 1.0, %v393
    %v395 = vmul.f32 %v242, %v304
    %v396 = vmul.f32 %v245, %v319
    %v397 = vmul.f32 %v248, %v334
    %v398 = vmul.f32 %v251, %v349
    %v399 = vmul.f32 %v254, %v364
    %v400 = vmul.f32 %v257, %v379
    %v401 = vmul.f32 %v260, %v394
    %v402 = vld [vmem:[%s8] sm:$0x1]
    %v404 = vperm.slane %v402, 0
    %v406 = vmul.f32 %v395, %v404
    %v407 = vmul.f32 %v396, %v404
    %v408 = vmul.f32 %v397, %v404
    %v409 = vmul.f32 %v398, %v404
    %v410 = vmul.f32 %v399, %v404
    %v411 = vmul.f32 %v400, %v404
    %v412 = vmul.f32 %v401, %v404
    %v413 = vsel %vm202, %v406, 0.0
    %414 = vadd.xlane.f32.xlu0 %v413
    %v415 = vpop.xlane.xlu0 %414
    %v416 = vsel %vm202, %v407, 0.0
    %417 = vadd.xlane.f32.xlu0 %v416
    %v418 = vpop.xlane.xlu0 %417
    %v419 = vsel %vm202, %v408, 0.0
    %420 = vadd.xlane.f32.xlu0 %v419
    %v421 = vpop.xlane.xlu0 %420
    %v422 = vsel %vm202, %v409, 0.0
    %423 = vadd.xlane.f32.xlu0 %v422
    %v424 = vpop.xlane.xlu0 %423
    %v425 = vsel %vm202, %v410, 0.0
    %426 = vadd.xlane.f32.xlu0 %v425
    %v427 = vpop.xlane.xlu0 %426
    %v428 = vsel %vm202, %v411, 0.0
    %429 = vadd.xlane.f32.xlu0 %v428
    %v430 = vpop.xlane.xlu0 %429
    %v431 = vsel %vm202, %v412, 0.0
    %432 = vadd.xlane.f32.xlu0 %v431
    %v433 = vpop.xlane.xlu0 %432
    %v434 = vld [vmem:[%s2] sm:$0xff]
    %v435 = vld [vmem:[%s2 + $0x8] sm:$0xff]
    %v436 = vld [vmem:[%s2 + $0x10] sm:$0xff]
    %v437 = vld [vmem:[%s2 + $0x18] sm:$0xff]
    %v438 = vld [vmem:[%s2 + $0x20] sm:$0xff]
    %v439 = vld [vmem:[%s2 + $0x28] sm:$0xff]
    %v440 = vld [vmem:[%s2 + $0x30] sm:$0xff]
    %v441 = vmul.f32 %v415, %v434
    %v442 = vmul.f32 %v418, %v435
    %v443 = vmul.f32 %v421, %v436
    %v444 = vmul.f32 %v424, %v437
    %v445 = vmul.f32 %v427, %v438
    %v446 = vmul.f32 %v430, %v439
    %v447 = vmul.f32 %v433, %v440
    %v448 = vld [vmem:[%s1] sm:$0xff]
    %v449 = vld [vmem:[%s1 + $0x8] sm:$0xff]
    %v450 = vld [vmem:[%s1 + $0x10] sm:$0xff]
    %v451 = vld [vmem:[%s1 + $0x18] sm:$0xff]
    %v452 = vld [vmem:[%s1 + $0x20] sm:$0xff]
    %v453 = vld [vmem:[%s1 + $0x28] sm:$0xff]
    %v454 = vld [vmem:[%s1 + $0x30] sm:$0xff]
    %456 = vset.pattern.permute.xlu0 0
    %457 = vperm.xlu0 %456, %v441
    %v458 = vpop.permute.xlu0 %457
    %461 = vset.pattern.permute.xlu0 0
    %462 = vperm.xlu0 %461, %v442
    %v463 = vpop.permute.xlu0 %462
    %466 = vset.pattern.permute.xlu0 0
    %467 = vperm.xlu0 %466, %v443
    %v468 = vpop.permute.xlu0 %467
    %471 = vset.pattern.permute.xlu0 0
    %472 = vperm.xlu0 %471, %v444
    %v473 = vpop.permute.xlu0 %472
    %476 = vset.pattern.permute.xlu0 0
    %477 = vperm.xlu0 %476, %v445
    %v478 = vpop.permute.xlu0 %477
    %481 = vset.pattern.permute.xlu0 0
    %482 = vperm.xlu0 %481, %v446
    %v483 = vpop.permute.xlu0 %482
    %486 = vset.pattern.permute.xlu0 0
    %487 = vperm.xlu0 %486, %v447
    %v488 = vpop.permute.xlu0 %487
    %v490 = vmul.f32 %v448, %v458
    %v491 = vmul.f32 %v449, %v463
    %v492 = vmul.f32 %v450, %v468
    %v493 = vmul.f32 %v451, %v473
    %v494 = vmul.f32 %v452, %v478
    %v495 = vmul.f32 %v453, %v483
    %v496 = vmul.f32 %v454, %v488
    %v497 = vld [vmem:[%s3] sm:$0xff]
    %v498 = vld [vmem:[%s3 + $0x8] sm:$0xff]
    %v499 = vld [vmem:[%s3 + $0x10] sm:$0xff]
    %v500 = vld [vmem:[%s3 + $0x18] sm:$0xff]
    %v501 = vld [vmem:[%s3 + $0x20] sm:$0xff]
    %v502 = vld [vmem:[%s3 + $0x28] sm:$0xff]
    %v503 = vld [vmem:[%s3 + $0x30] sm:$0xff]
    %s504 = smul.u32 0, 128
    %v505 = vstv %s504
    %v506 = vsub.s32 %v497, %v505
    %v507 = vsub.s32 %v498, %v505
    %v508 = vsub.s32 %v499, %v505
    %v509 = vsub.s32 %v500, %v505
    %v510 = vsub.s32 %v501, %v505
    %v511 = vsub.s32 %v502, %v505
    %v512 = vsub.s32 %v503, %v505
    %v513 = vld [vmem:[#allocation2] sm:$0xff]
    %v514 = vld [vmem:[#allocation2 + $0x8] sm:$0xff]
    %v515 = vld [vmem:[#allocation2 + $0x10] sm:$0xff]
    %v516 = vld [vmem:[#allocation2 + $0x18] sm:$0xff]
    %v517 = vld [vmem:[#allocation2 + $0x20] sm:$0xff]
    %v518 = vld [vmem:[#allocation2 + $0x28] sm:$0xff]
    %v519 = vld [vmem:[#allocation2 + $0x30] sm:$0xff]
    %520 = vset.pattern.permute.xlu0 0
    %521 = vperm.xlu0 %520, %v506
    %v522 = vpop.permute.xlu0 %521
    %523 = vset.pattern.permute.xlu0 0
    %524 = vperm.xlu0 %523, %v507
    %v525 = vpop.permute.xlu0 %524
    %526 = vset.pattern.permute.xlu0 0
    %527 = vperm.xlu0 %526, %v508
    %v528 = vpop.permute.xlu0 %527
    %529 = vset.pattern.permute.xlu0 0
    %530 = vperm.xlu0 %529, %v509
    %v531 = vpop.permute.xlu0 %530
    %532 = vset.pattern.permute.xlu0 0
    %533 = vperm.xlu0 %532, %v510
    %v534 = vpop.permute.xlu0 %533
    %535 = vset.pattern.permute.xlu0 0
    %536 = vperm.xlu0 %535, %v511
    %v537 = vpop.permute.xlu0 %536
    %538 = vset.pattern.permute.xlu0 0
    %539 = vperm.xlu0 %538, %v512
    %v540 = vpop.permute.xlu0 %539
    %vm541 = vcmp.eq.s32.totalorder %v513, %v522
    %vm542 = vcmp.eq.s32.totalorder %v514, %v525
    %vm543 = vcmp.eq.s32.totalorder %v515, %v528
    %vm544 = vcmp.eq.s32.totalorder %v516, %v531
    %vm545 = vcmp.eq.s32.totalorder %v517, %v534
    %vm546 = vcmp.eq.s32.totalorder %v518, %v537
    %vm547 = vcmp.eq.s32.totalorder %v519, %v540
    %v548 = vsel %vm541, 1, 0
    %v549 = vsel %vm542, 1, 0
    %v550 = vsel %vm543, 1, 0
    %v551 = vsel %vm544, 1, 0
    %v552 = vsel %vm545, 1, 0
    %v553 = vsel %vm546, 1, 0
    %v554 = vsel %vm547, 1, 0
    %v555 = vcvt.s32.f32 %v548
    %v556 = vcvt.s32.f32 %v549
    %v557 = vcvt.s32.f32 %v550
    %v558 = vcvt.s32.f32 %v551
    %v559 = vcvt.s32.f32 %v552
    %v560 = vcvt.s32.f32 %v553
    %v561 = vcvt.s32.f32 %v554
    %v562 = vld [vmem:[#allocation3] sm:$0xff]
    %563 = vxpose.xlu0.b32.start [1/16] %v490, 128
    %564 = vxpose.xlu0.b32.cont [2/16] %v491, 128
    %565 = vxpose.xlu0.b32.cont [3/16] %v492, 128
    %566 = vxpose.xlu0.b32.cont [4/16] %v493, 128
    %567 = vxpose.xlu0.b32.cont [5/16] %v494, 128
    %568 = vxpose.xlu0.b32.cont [6/16] %v495, 128
    %569 = vxpose.xlu0.b32.cont [7/16] %v496, 128
    %570 = vxpose.xlu0.b32.cont [8/16] 0.0, 128
    %571 = vxpose.xlu0.b32.cont [9/16] 0.0, 128
    %572 = vxpose.xlu0.b32.cont [10/16] 0.0, 128
    %573 = vxpose.xlu0.b32.cont [11/16] 0.0, 128
    %574 = vxpose.xlu0.b32.cont [12/16] 0.0, 128
    %575 = vxpose.xlu0.b32.cont [13/16] 0.0, 128
    %576 = vxpose.xlu0.b32.cont [14/16] 0.0, 128
    %577 = vxpose.xlu0.b32.cont [15/16] 0.0, 128
    %578 = vxpose.xlu0.b32.end [16/16] 0.0, 128
    %v579 = vpop.trf.xlu0
    %v580 = vpop.trf.xlu0
    %v581 = vpop.trf.xlu0
    %v582 = vpop.trf.xlu0
    %v583 = vpop.trf.xlu0
    %v584 = vpop.trf.xlu0
    %v585 = vpop.trf.xlu0
    %v586 = vpop.trf.xlu0
    %v587 = vpop.trf.xlu0
    %v588 = vpop.trf.xlu0
    %v589 = vpop.trf.xlu0
    %v590 = vpop.trf.xlu0
    %v591 = vpop.trf.xlu0
    %v592 = vpop.trf.xlu0
    %v593 = vpop.trf.xlu0
    %v594 = vpop.trf.xlu0
    %vm595 = vcmask 457728
    %v597 = vsel %vm595, %v579, 0
    %599 = vmatpush.msra.mxu0 0.0
    %600 = vmatpush.msra.mxu0 0.0
    %601 = vmatpush.msra.mxu0 0.0
    %602 = vmatpush.msra.mxu0 0.0
    %603 = vmatpush.msra.mxu0 0.0
    %604 = vmatpush.msra.mxu0 0.0
    %605 = vmatpush.msra.mxu0 0.0
    %606 = vmatpush.msra.mxu0 0.0
    %607 = vmatpush.msra.mxu0 0.0
    %608 = vmatpush.msra.mxu0 %v561
    %609 = vmatpush.msra.mxu0 %v560
    %610 = vmatpush.msra.mxu0 %v559
    %611 = vmatpush.msra.mxu0 %v558
    %612 = vmatpush.msra.mxu0 %v557
    %613 = vmatpush.msra.mxu0 %v556
    %614 = vmatpush.msra.mxu0 %v555
    %615 = vmatmul.f32.gmra.mxu0 %v597
    %v616 = vpop.f32.mrf.mxu0
    %v617 = vadd.f32 0.0, %v616
    %618 = vdwg.mxu0
    %v619 = vadd.f32 %v562, %v617
    %620 = vst [vmem:[#allocation3] sm:$0xff] %v619
    // Predicated region
    $region42: #{tpu_custom_call.1} parent=1 // pred_check
      %p621 = pneg %p33
    $region43: #{tpu_custom_call.1} parent=1 // pred_check_branch
      %623 = sbr.rel (%p621) target = $region45
    $region44: #{tpu_custom_call.1} parent=1 // pred_region
      %v624 = vld [vmem:[#allocation3] sm:$0xff]
      %v625 = vrcp.pop 100.0
      %v626 = vmul.f32 100.0, %v625
      %v627 = vsub.f32 1.0, %v626
      %v628 = vmul.f32 %v625, %v627
      %v629 = vadd.f32 %v625, %v628
      %vm630 = vweird.f32 %v625
      %v631 = vsel %vm630, %v625, %v629
      %v632 = vmul.f32 %v624, %v631
      %v633 = vld [vmem:[%s4] sm:$0xff]
      %v634 = vadd.f32 %v633, %v632
      %v635 = vld [vmem:[%s5] sm:$0x1]
      %v637 = vperm.slane %v635, 0
      %v639 = vmul.f32 %v634, %v637
      %640 = vst [vmem:[#allocation3] sm:$0xff] %v639
    $region45: #{tpu_custom_call.1} parent=1 // pred_fallthru
      _
    // Predicated region
    $region46: #{tpu_custom_call.1} parent=1 // pred_check
      _
    $region47: #{tpu_custom_call.1} parent=1 // pred_check_branch
      %642 = sbr.rel (0) target = $region49
    $region48: #{tpu_custom_call.1} parent=1 // pred_region
      %644 = vsyncadd [#allocation4], 0
      %s646 = sshll.u32 [#allocation3], 4
      %s647 = int_to_ptr.vmem [resolvable:$true] %s646
      %s648 = sshll.u32 %s9, 4
      %s649 = int_to_ptr.hbm [resolvable:$true] %s648
      %651 = dma.vmem_to_hbm [thread:$0]  %s647, 128, %s649, [#allocation4]
    $region49: #{tpu_custom_call.1} parent=1 // pred_fallthru
      _
    // Predicated region
    $region50: #{tpu_custom_call.1} parent=1 // pred_check
      _
    $region51: #{tpu_custom_call.1} parent=1 // pred_check_branch
      %653 = sbr.rel (0) target = $region53
    $region52: #{tpu_custom_call.1} parent=1 // pred_region
      %655 = dma.done [#allocation4], 128
    $region53: #{tpu_custom_call.1} parent=1 // pred_fallthru
      _
    %656 = vsyncpa [#allocation4], 1

</llo_original>
